<compile_context>
chip_gen: v7x
topology: tpu7x:2x2x1
jax: 0.10.0
libtpu: 0.0.40
codegen_flags: <defaults>
</compile_context>

<pallas_src>
import functools

import jax
import jax.numpy as jnp
from jax import lax
from jax.experimental import pallas as pl
from jax.experimental.pallas import tpu as pltpu


# ----------------------------- kernel body --------------------------------- #

def _gap_kernel(x_ref, o_ref, acc_ref, *, inv_hw):
    """x_ref: (TM, TK) chunk of the flattened (rows, HW) input.
    o_ref:  (TM, 1) output block (mean per row).
    acc_ref: (TM, LN) f32 lane-dense accumulator scratch, LN = min(128, TK)."""
    k = pl.program_id(1)

    @pl.when(k == 0)
    def _init():
        acc_ref[...] = jnp.zeros_like(acc_ref)

    tm, tk = x_ref.shape
    ln = acc_ref.shape[1]                # lane width of the accumulator
    n_strips = tk // ln
    rem = tk - n_strips * ln

    # Hot loop: per-strip upcast + elementwise VPU adds into the lane-dense
    # accumulator (no full-tile f32 temporary, no per-chunk XLU reduce).
    if n_strips <= 64:
        for s in range(n_strips):
            acc_ref[...] += x_ref[:, s * ln:(s + 1) * ln].astype(jnp.float32)
    else:
        def body(i, carry):
            start = pl.multiple_of(i * ln, ln)
            acc_ref[...] += x_ref[:, pl.ds(start, ln)].astype(jnp.float32)
            return carry
        lax.fori_loop(0, n_strips, body, 0, unroll=8)

    if rem:
        # Ragged lane tail (only when TK == HW and HW % 128 != 0).
        tail = x_ref[:, n_strips * ln:].astype(jnp.float32)          # (TM, rem)
        acc_ref[:, 0:rem] = acc_ref[:, 0:rem] + tail

    @pl.when(k == pl.num_programs(1) - 1)
    def _finalize():
        # Single cross-lane (XLU) reduce + scale, once per output tile.
        s = jnp.sum(acc_ref[...], axis=1, keepdims=True)             # (TM, 1)
        o_ref[...] = (s * inv_hw).astype(o_ref.dtype)


# ----------------------------- tiling helpers ------------------------------ #

def _vmem_capacity_bytes():
    try:
        cap = int(pltpu.get_tpu_info().vmem_capacity_bytes)
        if cap > 0:
            return cap
    except Exception:
        pass
    return 64 << 20  # conservative fallback: v7x per-TensorCore VMEM


def _round_up(x, m):
    return ((x + m - 1) // m) * m


def _choose_spatial_tile(hw_p, itemsize, budget):
    """TK: multiple of 128 dividing hw_p (or hw_p itself) such that an 8-row
    slab fits the per-tile budget."""
    if 8 * hw_p * itemsize <= budget or hw_p % 128 != 0:
        return hw_p
    n128 = hw_p // 128
    tk = 128
    for d in range(1, n128 + 1):
        if n128 % d == 0 and 8 * d * 128 * itemsize <= budget:
            tk = max(tk, d * 128)
    return tk


def _choose_rows_tile(rows, tk_bytes, budget):
    """Return (TM, rows_padded).  TM is a multiple of 8 dividing rows_padded
    (or TM == rows for tiny inputs), fits the budget, and leaves >= 2 blocks
    on the 'parallel' grid axis for v7x megacore whenever possible."""
    if rows <= 8:
        return rows, rows
    rows_p = _round_up(rows, 8)
    tm_budget = max(8, (budget // max(tk_bytes, 1)) // 8 * 8)
    half = max(8, (((rows_p + 1) // 2) // 8) * 8)       # 8-aligned <= ceil(rows_p/2)
    tm_cap = max(8, min(tm_budget, half))
    tm = 8
    d = 8
    while d <= tm_cap:
        if rows_p % d == 0:
            tm = d
        d += 8
    return tm, rows_p


# ------------------------------- wrapper ------------------------------------ #

def global_avg_pool2d(x, *, vmem_budget_bytes=None):
    """x: (N, C, H, W) -> (N, C); mean over H, W.  Matches F.avg_pool2d((H, W))."""
    N, C, H, W = x.shape
    HW = H * W
    rows = N * C
    itemsize = jnp.dtype(x.dtype).itemsize

    cap = _vmem_capacity_bytes()
    if vmem_budget_bytes is None:
        # ~8 MiB input tiles on v7x (64 MiB VMEM), ~16 MiB on v5e/v6e (128 MiB).
        vmem_budget_bytes = max(1 << 20, cap // 8)

    # Flatten (N, C, H, W) -> (N*C, H*W): free view, lane-dense DMA tiles,
    # fully dense sublanes even for small C.
    x2 = x.reshape(rows, HW)

    # Spatial padding only when a large odd-sized image must be chunked
    # (zeros do not change the sum; we divide by the true HW).
    hw_p = HW
    if HW % 128 != 0 and 8 * HW * itemsize > vmem_budget_bytes:
        hw_p = _round_up(HW, 128)

    tk = _choose_spatial_tile(hw_p, itemsize, vmem_budget_bytes)
    tm, rows_p = _choose_rows_tile(rows, tk * itemsize, vmem_budget_bytes)

    if rows_p != rows or hw_p != HW:
        x2 = jnp.pad(x2, ((0, rows_p - rows), (0, hw_p - HW)))

    grid = (rows_p // tm, hw_p // tk)
    ln = min(128, tk)

    # Scoped-VMEM limit from the actual footprint, generation-aware cap.
    tile_bytes = tm * tk * itemsize
    needed = 2 * tile_bytes + 2 * tm * itemsize + tm * ln * 4 + (2 << 20)
    vmem_limit = int(min(int(cap * 0.75), max(cap // 2, needed)))

    kernel = functools.partial(_gap_kernel, inv_hw=1.0 / float(HW))

    out = pl.pallas_call(
        kernel,
        out_shape=jax.ShapeDtypeStruct((rows_p, 1), x.dtype),
        grid_spec=pltpu.PrefetchScalarGridSpec(
            num_scalar_prefetch=0,
            grid=grid,
            in_specs=[pl.BlockSpec((tm, tk), lambda i, k: (i, k))],
            out_specs=pl.BlockSpec((tm, 1), lambda i, k: (i, 0)),
            scratch_shapes=[pltpu.VMEM((tm, ln), jnp.float32)],
        ),
        compiler_params=pltpu.CompilerParams(
            dimension_semantics=("parallel", "arbitrary"),
            vmem_limit_bytes=vmem_limit,
        ),
        cost_estimate=pl.CostEstimate(
            flops=rows * HW,
            transcendentals=0,
            bytes_accessed=rows_p * hw_p * itemsize + rows_p * itemsize,
        ),
    )(x2)

    return out[:rows, 0].reshape(N, C)


# --------------------------------- test ------------------------------------- #

if __name__ == "__main__":
    key = jax.random.PRNGKey(0)

    # Main case: matches the module's small-shape spec.
    N, C, H, W = 2, 4, 16, 16
    x = jax.random.normal(key, (N, C, H, W), dtype=jnp.float32)
    out = jax.block_until_ready(global_avg_pool2d(x))
    ref = jnp.mean(x, axis=(2, 3))
    assert out.shape == (N, C), out.shape
    assert jnp.allclose(out, ref, atol=1e-5, rtol=1e-5)

    # Tiny budget forces spatial chunking + f32 accumulator across the
    # "arbitrary" grid axis.
    out2 = jax.block_until_ready(global_avg_pool2d(x, vmem_budget_bytes=2048))
    assert jnp.allclose(out2, ref, atol=1e-5, rtol=1e-5)

    # Odd spatial size (H*W not a multiple of 128 -> full-row block + lane tail).
    x3 = jax.random.normal(jax.random.PRNGKey(1), (3, 8, 10, 12), dtype=jnp.float32)
    out3 = jax.block_until_ready(global_avg_pool2d(x3))
    assert jnp.allclose(out3, jnp.mean(x3, axis=(2, 3)), atol=1e-5, rtol=1e-5)

    # bf16 input exercises the per-strip upcast path (f32 accumulation).
    xb = x.astype(jnp.bfloat16)
    out4 = jax.block_until_ready(global_avg_pool2d(xb))
    refb = jnp.mean(xb.astype(jnp.float32), axis=(2, 3))
    assert jnp.allclose(out4.astype(jnp.float32), refb, atol=1e-2, rtol=1e-2)

    print("KERNEL_OK")
</pallas_src>

<mosaic_0001>
module attributes {stable_mosaic.version = 11 : i64} {
  func.func @_gap_kernel(%arg0: i32, %arg1: i32, %arg2: memref<8x256xf32, #tpu.memory_space<vmem>>, %arg3: memref<8x1xf32, #tpu.memory_space<vmem>>, %arg4: memref<8x128xf32, #tpu.memory_space<vmem>>) attributes {dimension_semantics = [#tpu.dimension_semantics<parallel>, #tpu.dimension_semantics<arbitrary>], iteration_bounds = array<i64: 1, 1>, scalar_prefetch = 0 : i64, scratch_operands = 1 : i64, tpu.core_type = #tpu.core_type<tc>, window_params = [{transform_indices = @transform_0, window_bounds = array<i64: 8, 256>}, {transform_indices = @transform_1, window_bounds = array<i64: 8, 1>}]} {
    %c0_i32 = arith.constant 0 : i32
    %0 = arith.cmpi eq, %arg1, %c0_i32 : i32
    %1 = arith.extui %0 : i1 to i32
    %c0_i32_0 = arith.constant 0 : i32
    %2 = arith.cmpi ne, %1, %c0_i32_0 : i32
    scf.if %2 {
      %cst = arith.constant 0.000000e+00 : f32
      %14 = vector.broadcast %cst : f32 to vector<8x128xf32>
      %c0_13 = arith.constant 0 : index
      %c0_14 = arith.constant 0 : index
      %15 = vector.load %arg4[%c0_13, %c0_14] : memref<8x128xf32, #tpu.memory_space<vmem>>, vector<8x128xf32>
      tpu.vector_store %arg4[%c0_13, %c0_14], %14 {strides = array<i32>} : memref<8x128xf32, #tpu.memory_space<vmem>>, vector<8x128xf32>,
    } else {
    }
    %c0 = arith.constant 0 : index
    %c0_1 = arith.constant 0 : index
    %3 = vector.load %arg4[%c0, %c0_1] : memref<8x128xf32, #tpu.memory_space<vmem>>, vector<8x128xf32>
    %c0_2 = arith.constant 0 : index
    %c0_3 = arith.constant 0 : index
    %4 = vector.load %arg2[%c0_2, %c0_3] : memref<8x256xf32, #tpu.memory_space<vmem>>, vector<8x128xf32>
    %5 = arith.addf %3, %4 : vector<8x128xf32>
    %c0_4 = arith.constant 0 : index
    %c0_5 = arith.constant 0 : index
    %6 = vector.load %arg4[%c0_4, %c0_5] : memref<8x128xf32, #tpu.memory_space<vmem>>, vector<8x128xf32>
    tpu.vector_store %arg4[%c0_4, %c0_5], %5 {strides = array<i32>} : memref<8x128xf32, #tpu.memory_space<vmem>>, vector<8x128xf32>,
    %c0_6 = arith.constant 0 : index
    %c0_7 = arith.constant 0 : index
    %7 = vector.load %arg4[%c0_6, %c0_7] : memref<8x128xf32, #tpu.memory_space<vmem>>, vector<8x128xf32>
    %c0_8 = arith.constant 0 : index
    %c128 = arith.constant 128 : index
    %8 = vector.load %arg2[%c0_8, %c128] : memref<8x256xf32, #tpu.memory_space<vmem>>, vector<8x128xf32>
    %9 = arith.addf %7, %8 : vector<8x128xf32>
    %c0_9 = arith.constant 0 : index
    %c0_10 = arith.constant 0 : index
    %10 = vector.load %arg4[%c0_9, %c0_10] : memref<8x128xf32, #tpu.memory_space<vmem>>, vector<8x128xf32>
    tpu.vector_store %arg4[%c0_9, %c0_10], %9 {strides = array<i32>} : memref<8x128xf32, #tpu.memory_space<vmem>>, vector<8x128xf32>,
    %c0_i32_11 = arith.constant 0 : i32
    %11 = arith.cmpi eq, %arg1, %c0_i32_11 : i32
    %12 = arith.extui %11 : i1 to i32
    %c0_i32_12 = arith.constant 0 : i32
    %13 = arith.cmpi ne, %12, %c0_i32_12 : i32
    scf.if %13 {
      %c0_13 = arith.constant 0 : index
      %c0_14 = arith.constant 0 : index
      %14 = vector.load %arg4[%c0_13, %c0_14] : memref<8x128xf32, #tpu.memory_space<vmem>>, vector<8x128xf32>
      %cst = arith.constant dense<0.000000e+00> : vector<8xf32>
      %15 = vector.multi_reduction <add>, %14, %cst [1] : vector<8x128xf32> to vector<8xf32>
      %16 = vector.shape_cast %15 : vector<8xf32> to vector<8x1xf32>
      %cst_15 = arith.constant 3.906250e-03 : f32
      %17 = vector.broadcast %cst_15 : f32 to vector<8x1xf32>
      %18 = arith.mulf %16, %17 : vector<8x1xf32>
      %c0_16 = arith.constant 0 : index
      %c0_17 = arith.constant 0 : index
      %19 = vector.load %arg3[%c0_16, %c0_17] : memref<8x1xf32, #tpu.memory_space<vmem>>, vector<8x1xf32>
      tpu.vector_store %arg3[%c0_16, %c0_17], %18 {strides = array<i32>} : memref<8x1xf32, #tpu.memory_space<vmem>>, vector<8x1xf32>,
    } else {
    }
    return
  }
  func.func @transform_0(%arg0: i32, %arg1: i32) -> (i32, i32) {
    %c0_i32 = arith.constant 0 : i32
    return %arg0, %arg1 : i32, i32
  }
  func.func @transform_1(%arg0: i32, %arg1: i32) -> (i32, i32) {
    %c0_i32 = arith.constant 0 : i32
    %c0_i32_0 = arith.constant 0 : i32
    return %arg0, %c0_i32 : i32, i32
  }
}

</mosaic_0001>

<llo_original>
// kernel: tpu_custom_call.1
$region0: #{tpu_custom_call.1}
  #allocation0 [shape = 'u32[]', space=smem, size = 0x4, offset = 0x4, fixed_abs, tag = 'smem constant byte address 0x4 - core index']
  #allocation1 [shape = 'u32[144,128]{1,0:T(1,128)}', space=vmem, size = 0x12000, scoped, tag = 'internal scratch']
  #allocation2 [shape = 'f32[8,128]{1,0:T(8,128)}', space=vmem, size = 0x1000, scoped, tag = 'scratch operand']
  %s0 = inlined_call_operand.hbm [shape: f32[8,256], index: 0, kind: input, shape index: {}]
  %s1 = inlined_call_operand.vmem [shape: f32[8,1], index: 1, kind: output, shape index: {}]
  %s2 = sld [smem:[#allocation0]]
  $region26: #{tpu_custom_call.1} parent=0
    _
  %s4 = ssub.s32 1, %s2
  %s5 = scalar_select 0, %s4, %s2
  $region1: #{tpu_custom_call.1} parent=0
    #allocation3 [shape = 'u8[8192]{0}', space=vmem, size = 0x2000, scoped, tag = 'input window, operand 0, single buffered']
    #allocation4 [shape = 's32[1]{0}', space=sflag, size = 0x4, scoped, tag = 'scoped memory for tpu_custom_call.1']
    %6 = vsyncpa [#allocation4], 0
    // Predicated region
    $region2: #{tpu_custom_call.1} parent=1 // pred_check
      _
    $region3: #{tpu_custom_call.1} parent=1 // pred_check_branch
      %8 = sbr.rel (0) target = $region5
    $region4: #{tpu_custom_call.1} parent=1 // pred_region
      %s10 = ssub.s32 256, 256
      %11 = vsyncadd [#allocation4], %s10
      %s13 = sshll.u32 [#allocation3], 4
      %s14 = int_to_ptr.vmem [resolvable:$true] %s13
      %16 = dma.hbm_to_vmem [thread:$0]  %s0, 256, %s14, [#allocation4]
    $region5: #{tpu_custom_call.1} parent=1 // pred_fallthru
      _
    // Predicated region
    $region6: #{tpu_custom_call.1} parent=1 // pred_check
      _
    $region7: #{tpu_custom_call.1} parent=1 // pred_check_branch
      %18 = sbr.rel (0) target = $region9
    $region8: #{tpu_custom_call.1} parent=1 // pred_region
      %19 = dma.done [#allocation4], 256
    $region9: #{tpu_custom_call.1} parent=1 // pred_fallthru
      _
    %p20 = scmp.eq.s32.totalorder 0, 0
    // Predicated region
    $region10: #{tpu_custom_call.1} parent=1 // pred_check
      %p21 = pneg %p20
    $region11: #{tpu_custom_call.1} parent=1 // pred_check_branch
      %23 = sbr.rel (%p21) target = $region13
    $region12: #{tpu_custom_call.1} parent=1 // pred_region
      %24 = vst [vmem:[#allocation2] sm:$0xff] 0.0
    $region13: #{tpu_custom_call.1} parent=1 // pred_fallthru
      _
    %v25 = vld [vmem:[#allocation2] sm:$0xff]
    %v26 = vld [vmem:[#allocation3] sm:$0xff]
    %v27 = vadd.f32 %v25, %v26
    %28 = vst [vmem:[#allocation2] sm:$0xff] %v27
    %v29 = vld [vmem:[#allocation2] sm:$0xff]
    %v30 = vld [vmem:[#allocation3 + $0x8] sm:$0xff]
    %v31 = vadd.f32 %v29, %v30
    %32 = vst [vmem:[#allocation2] sm:$0xff] %v31
    // Predicated region
    $region14: #{tpu_custom_call.1} parent=1 // pred_check
      %p33 = pneg %p20
    $region15: #{tpu_custom_call.1} parent=1 // pred_check_branch
      %35 = sbr.rel (%p33) target = $region17
    $region16: #{tpu_custom_call.1} parent=1 // pred_region
      %v36 = vld [vmem:[#allocation2] sm:$0xff]
      %37 = vadd.xlane.f32.xlu0 %v36
      %v38 = vpop.xlane.xlu0 %37
      %v39 = vmul.f32 %v38, 0.00390625
      %vm40 = vcmask 7168
      %41 = vst.msk [vmem:[%s1] sm:$0xff] %vm40, %v39
    $region17: #{tpu_custom_call.1} parent=1 // pred_fallthru
      _
    // Predicated region
    $region18: #{tpu_custom_call.1} parent=1 // pred_check
      _
    $region19: #{tpu_custom_call.1} parent=1 // pred_check_branch
      %43 = sbr.rel (0) target = $region21
    $region20: #{tpu_custom_call.1} parent=1 // pred_region
      _
    $region21: #{tpu_custom_call.1} parent=1 // pred_fallthru
      _
    // Predicated region
    $region22: #{tpu_custom_call.1} parent=1 // pred_check
      _
    $region23: #{tpu_custom_call.1} parent=1 // pred_check_branch
      %45 = sbr.rel (0) target = $region25
    $region24: #{tpu_custom_call.1} parent=1 // pred_region
      _
    $region25: #{tpu_custom_call.1} parent=1 // pred_fallthru
      _
    %46 = vsyncpa [#allocation4], 1

</llo_original>
